<compile_context>
chip_gen: v7x
topology: tpu7x:2x2x1
jax: 0.10.0
libtpu: 0.0.40
codegen_flags: <defaults>
</compile_context>

<pallas_src>
import functools
import math

import jax
import jax.numpy as jnp
from jax.experimental import pallas as pl
from jax.experimental.pallas import tpu as pltpu


# ----------------------------- Pallas kernel --------------------------------

# Slab row layout (C = max(signal_dim, action_dim) cols, zero right-padded):
#   tile 0: rows [0, 8)   -> W_int rows: state rows then theta rows, zero pad
#   tile 1: rows [8, 16)  -> b_int replicated across all 8 sublanes
#   tile 2: rows [16, 24) -> W_hum rows: state rows then signal rows, zero pad
#   tile 3: rows [24, 32) -> b_hum replicated across all 8 sublanes
_W_INT, _B_INT, _W_HUM, _B_HUM = 0, 8, 16, 24


def _limit_kernel(st_ref, w_ref, out_ref, *, dims, batch):
    state_dim, theta_dim, signal_dim, action_dim = dims

    st = st_ref[...]          # (B, state_dim + theta_dim)  = cat(state, theta)
    w = w_ref[...]            # (32, C) packed parameter slab

    def bias_init(tile_row, n):
        # Bias is pre-replicated across its 8-row tile: for B <= 8 this is a
        # straight aligned vreg slice (no runtime sublane broadcast).
        if batch <= 8:
            return w[tile_row:tile_row + batch, :n]
        return jnp.broadcast_to(w[tile_row:tile_row + 1, :n], (batch, n))

    def affine(w_row0, bias_row0, xs, n):
        """bias + sum_k x[:, k] * W[k, :], as unrolled VPU broadcast MACs."""
        acc = bias_init(bias_row0, n)                             # (B, n)
        r = w_row0
        for x in xs:
            for k in range(x.shape[1]):                           # static unroll
                acc = acc + x[:, k:k + 1] * w[r:r + 1, :n]        # (B,1)*(1,n)
                r += 1
        return acc                                                # (B, n)

    # ---- interface_policy(cat(state, theta)): chain folded to one affine ----
    signals = jnp.tanh(affine(_W_INT, _B_INT, [st], signal_dim))

    # ---- human_policy(cat(state, signals)): chain folded to one affine ------
    state = st[:, :state_dim]
    action = jnp.tanh(affine(_W_HUM, _B_HUM, [state, signals], action_dim))

    out_ref[...] = action.astype(out_ref.dtype)


# ------------------------------ wrapper --------------------------------------

def limit_forward(state, theta, param_slab, dims):
    """Pallas implementation of LIMIT.forward(state, theta)."""
    state_dim, theta_dim, signal_dim, action_dim = dims
    B = state.shape[0]

    # Merge state & theta in the wrapper -> one fewer input DMA per call.
    st = jnp.concatenate([state, theta], axis=1).astype(jnp.float32)

    kernel = functools.partial(_limit_kernel, dims=dims, batch=B)
    vmem = lambda: pl.BlockSpec(memory_space=pltpu.MemorySpace.VMEM)

    flops = 2 * B * ((state_dim + theta_dim) * signal_dim
                     + (state_dim + signal_dim) * action_dim)
    transcendentals = B * (signal_dim + action_dim)       # tanh calls
    bytes_accessed = 4 * (st.size + param_slab.size + B * action_dim)

    return pl.pallas_call(
        kernel,
        out_shape=jax.ShapeDtypeStruct((B, action_dim), jnp.float32),
        in_specs=[vmem(), vmem()],
        out_specs=vmem(),
        cost_estimate=pl.CostEstimate(flops=flops,
                                      transcendentals=transcendentals,
                                      bytes_accessed=bytes_accessed),
    )(st, param_slab)


# --------------------------- parameter handling ------------------------------

def _xavier_uniform(key, in_f, out_f):
    """torch.nn.init.xavier_uniform_ (gain=1); stored [in, out] for x @ W."""
    lim = math.sqrt(6.0 / (in_f + out_f))
    return jax.random.uniform(key, (in_f, out_f), jnp.float32, -lim, lim)


def init_limit_raw_params(key, theta_dim=2, state_dim=2, action_dim=2,
                          signal_dim=2, hidden_dim1=16):
    """Unfolded parameters, matching the torch module's init (biases = 0)."""
    ks = jax.random.split(key, 6)
    z = lambda n: jnp.zeros((1, n), jnp.float32)
    return {
        "i1": _xavier_uniform(ks[0], state_dim + theta_dim, hidden_dim1),  "i1b": z(hidden_dim1),
        "i2": _xavier_uniform(ks[1], hidden_dim1, hidden_dim1),            "i2b": z(hidden_dim1),
        "i3": _xavier_uniform(ks[2], hidden_dim1, signal_dim),             "i3b": z(signal_dim),
        "h1": _xavier_uniform(ks[3], state_dim + signal_dim, hidden_dim1), "h1b": z(hidden_dim1),
        "h2": _xavier_uniform(ks[4], hidden_dim1, hidden_dim1),            "h2b": z(hidden_dim1),
        "h3": _xavier_uniform(ks[5], hidden_dim1, action_dim),             "h3b": z(action_dim),
    }


def fold_and_pack_params(raw, *, state_dim, theta_dim, signal_dim, action_dim):
    """Fold each activation-free 3-layer chain into one affine map and pack
    everything into a single (32, C) f32 slab whose layout keeps every
    sublane slice the kernel takes inside one 8-row tile (see _limit_kernel)."""
    assert state_dim + theta_dim <= 8 and state_dim + signal_dim <= 8

    Wi = raw["i1"] @ raw["i2"] @ raw["i3"]
    bi = raw["i1b"] @ raw["i2"] @ raw["i3"] + raw["i2b"] @ raw["i3"] + raw["i3b"]
    Wh = raw["h1"] @ raw["h2"] @ raw["h3"]
    bh = raw["h1b"] @ raw["h2"] @ raw["h3"] + raw["h2b"] @ raw["h3"] + raw["h3b"]

    C = max(signal_dim, action_dim)

    def w_tile(W):   # pad weight rows up to a full 8-row tile
        return jnp.pad(W, ((0, 8 - W.shape[0]), (0, C - W.shape[1])))

    def b_tile(b):   # replicate bias across all 8 rows of its tile (offline)
        b = jnp.pad(b, ((0, 0), (0, C - b.shape[1])))
        return jnp.tile(b, (8, 1))

    slab = jnp.concatenate([w_tile(Wi), b_tile(bi), w_tile(Wh), b_tile(bh)], axis=0)
    return slab.astype(jnp.float32)


# pure-JAX reference: the ORIGINAL (unfolded) 6-Linear forward, for checking.
def limit_forward_ref(state, theta, p):
    st = jnp.concatenate([state, theta], axis=1)
    x = st @ p["i1"] + p["i1b"]
    x = x @ p["i2"] + p["i2b"]
    sig = jnp.tanh(x @ p["i3"] + p["i3b"])
    ss = jnp.concatenate([state, sig], axis=1)
    y = ss @ p["h1"] + p["h1b"]
    y = y @ p["h2"] + p["h2b"]
    return jnp.tanh(y @ p["h3"] + p["h3b"])


# --------------------------------- main ---------------------------------------

if __name__ == "__main__":
    key = jax.random.PRNGKey(0)
    k_param, k_state, k_theta = jax.random.split(key, 3)

    B, state_dim, theta_dim, signal_dim, action_dim = 8, 2, 2, 2, 2
    dims = (state_dim, theta_dim, signal_dim, action_dim)

    raw = init_limit_raw_params(k_param, theta_dim=theta_dim, state_dim=state_dim,
                                action_dim=action_dim, signal_dim=signal_dim)
    slab = fold_and_pack_params(raw, state_dim=state_dim, theta_dim=theta_dim,
                                signal_dim=signal_dim, action_dim=action_dim)

    state = jax.random.normal(k_state, (B, state_dim), jnp.float32)
    theta = jax.random.normal(k_theta, (B, theta_dim), jnp.float32)

    out = jax.block_until_ready(limit_forward(state, theta, slab, dims))
    ref = limit_forward_ref(state, theta, raw)

    assert out.shape == (B, action_dim)
    # Folding reorders fp32 summation; compare with tolerance, not equality.
    assert jnp.allclose(out, ref, atol=1e-5, rtol=1e-5), (out, ref)

    print("KERNEL_OK")
</pallas_src>

<mosaic_0001>
module attributes {stable_mosaic.version = 11 : i64} {
  func.func @_limit_kernel(%arg0: memref<8x4xf32, #tpu.memory_space<vmem>>, %arg1: memref<32x2xf32, #tpu.memory_space<vmem>>, %arg2: memref<8x2xf32, #tpu.memory_space<vmem>>) attributes {dimension_semantics = [], scalar_prefetch = 0 : i64, scratch_operands = 0 : i64, tpu.core_type = #tpu.core_type<tc>} {
    %c0 = arith.constant 0 : index
    %c0_0 = arith.constant 0 : index
    %0 = vector.load %arg0[%c0, %c0_0] : memref<8x4xf32, #tpu.memory_space<vmem>>, vector<8x4xf32>
    %c0_1 = arith.constant 0 : index
    %c0_2 = arith.constant 0 : index
    %1 = vector.load %arg1[%c0_1, %c0_2] : memref<32x2xf32, #tpu.memory_space<vmem>>, vector<32x2xf32>
    %2 = vector.extract_strided_slice %1 {offsets = [8, 0], sizes = [8, 2], strides = [1, 1]} : vector<32x2xf32> to vector<8x2xf32>
    %3 = vector.extract_strided_slice %0 {offsets = [0, 0], sizes = [8, 1], strides = [1, 1]} : vector<8x4xf32> to vector<8x1xf32>
    %4 = vector.extract_strided_slice %1 {offsets = [0, 0], sizes = [1, 2], strides = [1, 1]} : vector<32x2xf32> to vector<1x2xf32>
    %5 = vector.broadcast %3 : vector<8x1xf32> to vector<8x2xf32>
    %6 = vector.broadcast %4 : vector<1x2xf32> to vector<8x2xf32>
    %7 = arith.mulf %5, %6 : vector<8x2xf32>
    %8 = arith.addf %2, %7 : vector<8x2xf32>
    %9 = vector.extract_strided_slice %0 {offsets = [0, 1], sizes = [8, 1], strides = [1, 1]} : vector<8x4xf32> to vector<8x1xf32>
    %10 = vector.extract_strided_slice %1 {offsets = [1, 0], sizes = [1, 2], strides = [1, 1]} : vector<32x2xf32> to vector<1x2xf32>
    %11 = vector.broadcast %9 : vector<8x1xf32> to vector<8x2xf32>
    %12 = vector.broadcast %10 : vector<1x2xf32> to vector<8x2xf32>
    %13 = arith.mulf %11, %12 : vector<8x2xf32>
    %14 = arith.addf %8, %13 : vector<8x2xf32>
    %15 = vector.extract_strided_slice %0 {offsets = [0, 2], sizes = [8, 1], strides = [1, 1]} : vector<8x4xf32> to vector<8x1xf32>
    %16 = vector.extract_strided_slice %1 {offsets = [2, 0], sizes = [1, 2], strides = [1, 1]} : vector<32x2xf32> to vector<1x2xf32>
    %17 = vector.broadcast %15 : vector<8x1xf32> to vector<8x2xf32>
    %18 = vector.broadcast %16 : vector<1x2xf32> to vector<8x2xf32>
    %19 = arith.mulf %17, %18 : vector<8x2xf32>
    %20 = arith.addf %14, %19 : vector<8x2xf32>
    %21 = vector.extract_strided_slice %0 {offsets = [0, 3], sizes = [8, 1], strides = [1, 1]} : vector<8x4xf32> to vector<8x1xf32>
    %22 = vector.extract_strided_slice %1 {offsets = [3, 0], sizes = [1, 2], strides = [1, 1]} : vector<32x2xf32> to vector<1x2xf32>
    %23 = vector.broadcast %21 : vector<8x1xf32> to vector<8x2xf32>
    %24 = vector.broadcast %22 : vector<1x2xf32> to vector<8x2xf32>
    %25 = arith.mulf %23, %24 : vector<8x2xf32>
    %26 = arith.addf %20, %25 : vector<8x2xf32>
    %27 = math.tanh %26 : vector<8x2xf32>
    %28 = vector.extract_strided_slice %0 {offsets = [0, 0], sizes = [8, 2], strides = [1, 1]} : vector<8x4xf32> to vector<8x2xf32>
    %29 = vector.extract_strided_slice %1 {offsets = [24, 0], sizes = [8, 2], strides = [1, 1]} : vector<32x2xf32> to vector<8x2xf32>
    %30 = vector.extract_strided_slice %28 {offsets = [0, 0], sizes = [8, 1], strides = [1, 1]} : vector<8x2xf32> to vector<8x1xf32>
    %31 = vector.extract_strided_slice %1 {offsets = [16, 0], sizes = [1, 2], strides = [1, 1]} : vector<32x2xf32> to vector<1x2xf32>
    %32 = vector.broadcast %30 : vector<8x1xf32> to vector<8x2xf32>
    %33 = vector.broadcast %31 : vector<1x2xf32> to vector<8x2xf32>
    %34 = arith.mulf %32, %33 : vector<8x2xf32>
    %35 = arith.addf %29, %34 : vector<8x2xf32>
    %36 = vector.extract_strided_slice %28 {offsets = [0, 1], sizes = [8, 1], strides = [1, 1]} : vector<8x2xf32> to vector<8x1xf32>
    %37 = vector.extract_strided_slice %1 {offsets = [17, 0], sizes = [1, 2], strides = [1, 1]} : vector<32x2xf32> to vector<1x2xf32>
    %38 = vector.broadcast %36 : vector<8x1xf32> to vector<8x2xf32>
    %39 = vector.broadcast %37 : vector<1x2xf32> to vector<8x2xf32>
    %40 = arith.mulf %38, %39 : vector<8x2xf32>
    %41 = arith.addf %35, %40 : vector<8x2xf32>
    %42 = vector.extract_strided_slice %27 {offsets = [0, 0], sizes = [8, 1], strides = [1, 1]} : vector<8x2xf32> to vector<8x1xf32>
    %43 = vector.extract_strided_slice %1 {offsets = [18, 0], sizes = [1, 2], strides = [1, 1]} : vector<32x2xf32> to vector<1x2xf32>
    %44 = vector.broadcast %42 : vector<8x1xf32> to vector<8x2xf32>
    %45 = vector.broadcast %43 : vector<1x2xf32> to vector<8x2xf32>
    %46 = arith.mulf %44, %45 : vector<8x2xf32>
    %47 = arith.addf %41, %46 : vector<8x2xf32>
    %48 = vector.extract_strided_slice %27 {offsets = [0, 1], sizes = [8, 1], strides = [1, 1]} : vector<8x2xf32> to vector<8x1xf32>
    %49 = vector.extract_strided_slice %1 {offsets = [19, 0], sizes = [1, 2], strides = [1, 1]} : vector<32x2xf32> to vector<1x2xf32>
    %50 = vector.broadcast %48 : vector<8x1xf32> to vector<8x2xf32>
    %51 = vector.broadcast %49 : vector<1x2xf32> to vector<8x2xf32>
    %52 = arith.mulf %50, %51 : vector<8x2xf32>
    %53 = arith.addf %47, %52 : vector<8x2xf32>
    %54 = math.tanh %53 : vector<8x2xf32>
    %c0_3 = arith.constant 0 : index
    %c0_4 = arith.constant 0 : index
    %55 = vector.load %arg2[%c0_3, %c0_4] : memref<8x2xf32, #tpu.memory_space<vmem>>, vector<8x2xf32>
    tpu.vector_store %arg2[%c0_3, %c0_4], %54 {strides = array<i32>} : memref<8x2xf32, #tpu.memory_space<vmem>>, vector<8x2xf32>,
    return
  }
}

</mosaic_0001>

<llo_original>
// kernel: tpu_custom_call.1
$region0: #{tpu_custom_call.1}
  #allocation0 [shape = 'u32[]', space=smem, size = 0x4, offset = 0x4, fixed_abs, tag = 'smem constant byte address 0x4 - core index']
  #allocation1 [shape = 'u32[144,128]{1,0:T(1,128)}', space=vmem, size = 0x12000, scoped, tag = 'internal scratch']
  %s0 = inlined_call_operand.vmem [shape: f32[8,4], index: 0, kind: input, shape index: {}]
  %s1 = inlined_call_operand.vmem [shape: f32[32,2], index: 1, kind: input, shape index: {}]
  %s2 = inlined_call_operand.vmem [shape: f32[8,2], index: 2, kind: output, shape index: {}]
  %s3 = sld [smem:[#allocation0]]
  $region18: #{tpu_custom_call.1} parent=0
    _
  %s5 = ssub.s32 1, %s3
  %s6 = scalar_select 0, %s5, %s3
  // Predicated region
  $region2: #{tpu_custom_call.1} parent=0 // pred_check
    _
  $region3: #{tpu_custom_call.1} parent=0 // pred_check_branch
    %8 = sbr.rel (0) target = $region5
  $region4: #{tpu_custom_call.1} parent=0 // pred_region
    _
  $region5: #{tpu_custom_call.1} parent=0 // pred_fallthru
    _
  // Predicated region
  $region6: #{tpu_custom_call.1} parent=0 // pred_check
    _
  $region7: #{tpu_custom_call.1} parent=0 // pred_check_branch
    %10 = sbr.rel (0) target = $region9
  $region8: #{tpu_custom_call.1} parent=0 // pred_region
    _
  $region9: #{tpu_custom_call.1} parent=0 // pred_fallthru
    _
  %v11 = vld [vmem:[%s0] sm:$0xff]
  %v12 = vld [vmem:[%s1] sm:$0xff]
  %v13 = vld [vmem:[%s1 + $0x8] sm:$0xff]
  %v14 = vld [vmem:[%s1 + $0x10] sm:$0xff]
  %v15 = vld [vmem:[%s1 + $0x18] sm:$0xff]
  %17 = vset.pattern.permute.xlu0 0
  %18 = vperm.xlu0 %17, %v11
  %v19 = vpop.permute.xlu0 %18
  %v21 = vlaneseq
  %v22 = vshrl.u32 %v21, 7
  %v23 = vsub.s32 0, %v22
  %v24 = vrot.slane %v12, %v23
  %v25 = vmul.f32 %v19, %v24
  %v26 = vadd.f32 %v13, %v25
  %27 = vset.pattern.permute.xlu0 1
  %28 = vperm.xlu0 %27, %v11
  %v29 = vpop.permute.xlu0 %28
  %v31 = vlaneseq
  %v32 = vshrl.u32 %v31, 7
  %v33 = vsub.s32 1, %v32
  %v34 = vrot.slane %v12, %v33
  %v35 = vmul.f32 %v29, %v34
  %v36 = vadd.f32 %v26, %v35
  %37 = vset.pattern.permute.xlu0 2
  %38 = vperm.xlu0 %37, %v11
  %v39 = vpop.permute.xlu0 %38
  %v41 = vlaneseq
  %v42 = vshrl.u32 %v41, 7
  %v43 = vsub.s32 2, %v42
  %v44 = vrot.slane %v12, %v43
  %v45 = vmul.f32 %v39, %v44
  %v46 = vadd.f32 %v36, %v45
  %47 = vset.pattern.permute.xlu0 3
  %48 = vperm.xlu0 %47, %v11
  %v49 = vpop.permute.xlu0 %48
  %v51 = vlaneseq
  %v52 = vshrl.u32 %v51, 7
  %v53 = vsub.s32 3, %v52
  %v54 = vrot.slane %v12, %v53
  %v55 = vmul.f32 %v49, %v54
  %v56 = vadd.f32 %v46, %v55
  %v57 = vtanh.pop %v56
  %v58 = vlaneseq
  %v59 = vshrl.u32 %v58, 7
  %v60 = vsub.s32 0, %v59
  %v61 = vrot.slane %v14, %v60
  %v62 = vmul.f32 %v19, %v61
  %v63 = vadd.f32 %v15, %v62
  %v64 = vlaneseq
  %v65 = vshrl.u32 %v64, 7
  %v66 = vsub.s32 1, %v65
  %v67 = vrot.slane %v14, %v66
  %v68 = vmul.f32 %v29, %v67
  %v69 = vadd.f32 %v63, %v68
  %71 = vset.pattern.permute.xlu0 0
  %72 = vperm.xlu0 %71, %v57
  %v73 = vpop.permute.xlu0 %72
  %v75 = vlaneseq
  %v76 = vshrl.u32 %v75, 7
  %v77 = vsub.s32 2, %v76
  %v78 = vrot.slane %v14, %v77
  %v79 = vmul.f32 %v73, %v78
  %v80 = vadd.f32 %v69, %v79
  %81 = vset.pattern.permute.xlu0 1
  %82 = vperm.xlu0 %81, %v57
  %v83 = vpop.permute.xlu0 %82
  %v85 = vlaneseq
  %v86 = vshrl.u32 %v85, 7
  %v87 = vsub.s32 3, %v86
  %v88 = vrot.slane %v14, %v87
  %v89 = vmul.f32 %v83, %v88
  %v90 = vadd.f32 %v80, %v89
  %v91 = vtanh.pop %v90
  %vm92 = vcmask 15360
  %93 = vst.msk [vmem:[%s2] sm:$0xff] %vm92, %v91
  // Predicated region
  $region10: #{tpu_custom_call.1} parent=0 // pred_check
    _
  $region11: #{tpu_custom_call.1} parent=0 // pred_check_branch
    %95 = sbr.rel (0) target = $region13
  $region12: #{tpu_custom_call.1} parent=0 // pred_region
    _
  $region13: #{tpu_custom_call.1} parent=0 // pred_fallthru
    _
  // Predicated region
  $region14: #{tpu_custom_call.1} parent=0 // pred_check
    _
  $region15: #{tpu_custom_call.1} parent=0 // pred_check_branch
    %97 = sbr.rel (0) target = $region17
  $region16: #{tpu_custom_call.1} parent=0 // pred_region
    _
  $region17: #{tpu_custom_call.1} parent=0 // pred_fallthru
    _

</llo_original>
